<compile_context>
chip_gen: v5e
topology: v5e:2x2
jax: 0.10.0
libtpu: 0.0.40
codegen_flags: <defaults>
</compile_context>

<pallas_src>
import functools
import math

import jax
import jax.numpy as jnp
import numpy as np
from jax import lax
from jax.experimental import pallas as pl
from jax.experimental.pallas import tpu as pltpu


# --------------------------------------------------------------------------------------
# Kernel
# --------------------------------------------------------------------------------------
def _att_kernel(x_ref, wq_ref, bq_ref, wk_ref, bk_ref, wv_ref, bv_ref,
                wl_ref, bl_ref, o_ref, *, num_heads, key_size, seq_len, key_tile):
    """One grid step: a rows = bb*T fused-batch slab of the full (B*T, E) problem."""
    rows, _ = x_ref.shape                  # static block shape
    T, H, D = seq_len, num_heads, key_size
    bb = rows // T                         # batch elements in this slab (static)
    BH = bb * H

    x_f32 = x_ref[...]                     # (rows, E) f32, kept for the residual
    x_bf = x_f32.astype(jnp.bfloat16)

    # ---- lane-dense Q/K/V projections: one MXU dot each, N = H*D columns -----------
    # (1/sqrt(D) is already folded into wq/bq at parameter-prep time.)
    def proj(w_ref, b_ref):
        y = jnp.dot(x_bf, w_ref[...], preferred_element_type=jnp.float32)
        return (y + b_ref[...]).astype(jnp.bfloat16)        # (rows, H*D)

    q = proj(wq_ref, bq_ref)
    k = proj(wk_ref, bk_ref)
    v = proj(wv_ref, bv_ref)

    # ---- split heads into a single leading batch dim: (H*bb, T, D) -----------------
    # Static lane slices + leading-axis concat (whole-tile moves).  A single batch dim
    # keeps the attention einsums in the 'bqd,bkd->bqk' form Mosaic lowers directly
    # (no multi-batch dot_general, no non-minor transpose).
    def to_heads(y):
        parts = [y[:, h * D:(h + 1) * D].reshape(bb, T, D) for h in range(H)]
        return parts[0] if H == 1 else jnp.concatenate(parts, axis=0)

    q3, k3, v3 = to_heads(q), to_heads(k), to_heads(v)

    num_kt = T // key_tile
    if num_kt <= 1:
        # Small-T path: full (BH, T, T) logits fit comfortably; plain stable softmax.
        s = jnp.einsum("bqd,bkd->bqk", q3, k3, preferred_element_type=jnp.float32)
        m = jnp.max(s, axis=-1, keepdims=True)
        p = jnp.exp(s - m)
        l = jnp.sum(p, axis=-1, keepdims=True)
        attn = jnp.einsum("bqk,bkd->bqd", p.astype(jnp.bfloat16), v3,
                          preferred_element_type=jnp.float32)
        # Normalize the small (BH, T, D) result, not the (BH, T, T) weights.
        attn = attn * pl.reciprocal(l, approx=False)
    else:
        # Flash-style online softmax over key tiles: the live set is (BH, T, key_tile),
        # never the full (BH, T, T).
        def body(kt, carry):
            m_i, l_i, acc = carry
            start = kt * key_tile
            k_t = lax.dynamic_slice_in_dim(k3, start, key_tile, axis=1)
            v_t = lax.dynamic_slice_in_dim(v3, start, key_tile, axis=1)
            s = jnp.einsum("bqd,bkd->bqk", q3, k_t,
                           preferred_element_type=jnp.float32)
            m_new = jnp.maximum(m_i, jnp.max(s, axis=-1, keepdims=True))
            alpha = jnp.exp(m_i - m_new)
            p = jnp.exp(s - m_new)
            l_new = alpha * l_i + jnp.sum(p, axis=-1, keepdims=True)
            pv = jnp.einsum("bqk,bkd->bqd", p.astype(jnp.bfloat16), v_t,
                            preferred_element_type=jnp.float32)
            return m_new, l_new, alpha * acc + pv

        m0 = jnp.full((BH, T, 1), -jnp.inf, jnp.float32)
        l0 = jnp.zeros((BH, T, 1), jnp.float32)
        a0 = jnp.zeros((BH, T, D), jnp.float32)
        _, l_f, acc = lax.fori_loop(0, num_kt, body, (m0, l0, a0))
        attn = acc * pl.reciprocal(l_f, approx=False)

    # ---- output projection + residual ----------------------------------------------
    # Accumulate each head's (rows, D) slab through its (D, E) row-slice of Wl on top
    # of residual + bias; no (rows, HD) lane concatenation is materialized and the only
    # store is a single lane-dense (rows, E) slab.
    wl = wl_ref[...]
    out = x_f32 + bl_ref[...]
    for h in range(H):
        a_h = attn[h * bb:(h + 1) * bb].reshape(rows, D).astype(jnp.bfloat16)
        out = out + jnp.dot(a_h, wl[h * D:(h + 1) * D, :],
                            preferred_element_type=jnp.float32)
    o_ref[...] = out


# --------------------------------------------------------------------------------------
# Tiling heuristics
# --------------------------------------------------------------------------------------
def _pick_key_tile(seq, max_tile=512):
    """Largest key-axis tile (multiple of 8, dividing T) not exceeding max_tile.
    Returns T itself when T is small (single-tile fast path in the kernel)."""
    if seq <= max_tile:
        return seq
    for t in range(max_tile, 7, -1):
        if seq % t == 0 and t % 8 == 0:
            return t
    return seq  # e.g. prime T: fall back to untiled (correctness first)


def _slab_vmem_bytes(bb, seq, embed, num_heads, key_size, key_tile):
    """Rough per-grid-step VMEM footprint (bytes) used for slab sizing."""
    rows = bb * seq
    hd = num_heads * key_size
    bh = bb * num_heads
    kt = min(key_tile, seq)
    b = 2 * 2 * rows * embed * 4                      # x-in + out slabs, double buffered
    b += 2 * (3 * embed * hd + hd * embed) * 2        # bf16 weights (default dbl buffer)
    b += 3 * rows * hd * (4 + 2)                      # q/k/v f32 accum + bf16 copies
    b += 2 * bh * seq * kt * 4                        # logits + exp tile
    b += bh * seq * key_size * 4 + rows * embed * 4   # attn accumulator + out accumulator
    return b


def _pick_batch_block(batch, seq, embed, num_heads, key_size, key_tile,
                      vmem_budget_bytes=24 * 1024 * 1024):
    """Batch elements per grid step.  rows = bb*seq must obey the (8,128) sublane rule
    whenever there is more than one block, fit a conservative VMEM budget (safe for
    v7x's 64 MiB / 32 MiB scoped default), and we prefer >= 2 grid blocks so both v7x
    TensorCores get work (costs nothing on single-TC v5e/v6e)."""
    divisors = [d for d in range(1, batch + 1) if batch % d == 0]
    cands = [d for d in divisors if d == batch or (d * seq) % 8 == 0]
    fitting = [d for d in cands
               if _slab_vmem_bytes(d, seq, embed, num_heads, key_size, key_tile)
               <= vmem_budget_bytes]
    if not fitting:
        fitting = [min(cands)]
    bb = max(fitting)
    if bb == batch and batch > 1:
        smaller = [d for d in fitting if d < batch]
        if smaller:                                   # keep both v7x TCs busy
            bb = max(smaller)
    return bb


# --------------------------------------------------------------------------------------
# Parameter prep (one-time) + forward wrapper
# --------------------------------------------------------------------------------------
def prepare_att_params(params, *, num_heads, key_size):
    """ONE-TIME parameter prep (outside the per-step forward): cast weights to bf16 for
    the MXU, fold the 1/sqrt(key_size) logit scale into Wq/bq, reshape biases to
    broadcastable (1, N) f32 rows.  Weights stay lane-dense (in, out)."""
    scale = np.float32(1.0 / math.sqrt(key_size))
    f32 = jnp.float32
    return {
        "wq": (params["wq"].astype(f32) * scale).astype(jnp.bfloat16),
        "bq": (params["bq"].astype(f32) * scale).reshape(1, -1),
        "wk": params["wk"].astype(jnp.bfloat16),
        "bk": params["bk"].astype(f32).reshape(1, -1),
        "wv": params["wv"].astype(jnp.bfloat16),
        "bv": params["bv"].astype(f32).reshape(1, -1),
        "wl": params["wl"].astype(jnp.bfloat16),
        "bl": params["bl"].astype(f32).reshape(1, -1),
    }


def att_module_forward(x, prepped, *, num_heads, key_size):
    """x: (B, T, E) f32; prepped: output of prepare_att_params."""
    B, T, E = x.shape
    HD = num_heads * key_size
    assert prepped["wq"].shape == (E, HD)
    assert prepped["wl"].shape == (HD, E)

    key_tile = _pick_key_tile(T)
    bb = _pick_batch_block(B, T, E, num_heads, key_size, key_tile)
    rows = bb * T
    num_blocks = B // bb

    x2 = x.reshape(B * T, E)                 # batch fused into the matmul M dimension

    kernel = functools.partial(_att_kernel, num_heads=num_heads, key_size=key_size,
                               seq_len=T, key_tile=key_tile)

    def const(shape):
        # Full-array block with a constant index map.
        # TODO(synk): at production sizes single-buffer these (pl.Buffered(1)) or stage
        # them once into VMEM scratch; double-buffering constant-index weights is pure
        # VMEM overhead.
        return pl.BlockSpec(shape, lambda i: (0,) * len(shape))

    est = _slab_vmem_bytes(bb, T, E, num_heads, key_size, key_tile)
    # >= the 32 MiB scoped default (raises v5e's 16 MiB default), capped well below
    # v7x's 64 MiB physical VMEM so the compiler keeps scratch headroom.
    vmem_limit = int(min(max(1.5 * est, 32 * 1024 * 1024), 56 * 1024 * 1024))

    flops = 8 * B * T * E * HD + 4 * B * num_heads * T * T * key_size
    transcendentals = B * num_heads * T * T
    bytes_accessed = 4 * 2 * B * T * E + 2 * 4 * E * HD + 4 * (3 * HD + E)

    out2 = pl.pallas_call(
        kernel,
        out_shape=jax.ShapeDtypeStruct((B * T, E), jnp.float32),
        grid_spec=pltpu.PrefetchScalarGridSpec(
            num_scalar_prefetch=0,
            grid=(num_blocks,),
            in_specs=[
                pl.BlockSpec((rows, E), lambda i: (i, 0)),     # x row slab
                const((E, HD)), const((1, HD)),                # Wq (pre-scaled), bq
                const((E, HD)), const((1, HD)),                # Wk, bk
                const((E, HD)), const((1, HD)),                # Wv, bv
                const((HD, E)), const((1, E)),                 # Wl, bl
            ],
            out_specs=pl.BlockSpec((rows, E), lambda i: (i, 0)),
        ),
        compiler_params=pltpu.CompilerParams(
            dimension_semantics=("parallel",),   # row slabs are independent
            vmem_limit_bytes=vmem_limit,
        ),
        cost_estimate=pl.CostEstimate(
            flops=flops,
            transcendentals=transcendentals,
            bytes_accessed=bytes_accessed,
        ),
    )(x2, prepped["wq"], prepped["bq"], prepped["wk"], prepped["bk"],
      prepped["wv"], prepped["bv"], prepped["wl"], prepped["bl"])

    return out2.reshape(B, T, E)


# --------------------------------------------------------------------------------------
# Pure-JAX reference (f32, reproduces the PyTorch forward exactly)
# --------------------------------------------------------------------------------------
def att_module_reference(x, params, *, num_heads, key_size):
    *lead, _ = x.shape
    q = x @ params["wq"] + params["bq"]
    k = x @ params["wk"] + params["bk"]
    v = x @ params["wv"] + params["bv"]
    q = q.reshape(*lead, num_heads, key_size)
    k = k.reshape(*lead, num_heads, key_size)
    v = v.reshape(*lead, num_heads, key_size)
    logits = jnp.einsum("...thd,...Thd->...htT", q, k) / np.sqrt(key_size).astype(np.float32)
    w = jax.nn.softmax(logits, axis=-1)
    attn = jnp.einsum("...htT,...Thd->...thd", w, v)
    attn = attn.reshape(*lead, num_heads * key_size)
    out = attn @ params["wl"] + params["bl"]
    return x + out


if __name__ == "__main__":
    # Small shapes consistent with the module's forward.
    B, T = 2, 8
    num_heads, key_size = 4, 8
    E = num_heads * key_size           # embedding dim (residual requires out == E)
    HD = num_heads * key_size

    key = jax.random.PRNGKey(0)
    ks = jax.random.split(key, 9)

    params = {
        "wq": jax.random.normal(ks[0], (E, HD), jnp.float32) * 0.1,
        "bq": jax.random.normal(ks[1], (HD,), jnp.float32) * 0.1,
        "wk": jax.random.normal(ks[2], (E, HD), jnp.float32) * 0.1,
        "bk": jax.random.normal(ks[3], (HD,), jnp.float32) * 0.1,
        "wv": jax.random.normal(ks[4], (E, HD), jnp.float32) * 0.1,
        "bv": jax.random.normal(ks[5], (HD,), jnp.float32) * 0.1,
        "wl": jax.random.normal(ks[6], (HD, E), jnp.float32) * 0.1,
        "bl": jax.random.normal(ks[7], (E,), jnp.float32) * 0.1,
    }
    x = jax.random.normal(ks[8], (B, T, E), jnp.float32)

    # One-time parameter prep (bf16 weights, scale folded into Wq/bq).
    prepped = prepare_att_params(params, num_heads=num_heads, key_size=key_size)

    out = att_module_forward(x, prepped, num_heads=num_heads, key_size=key_size)
    out = jax.block_until_ready(out)

    ref = att_module_reference(x, params, num_heads=num_heads, key_size=key_size)
    # Tolerance reflects bf16 MXU operands (per the perf review); all softmax /
    # bias / residual math is kept in f32 and the softmax uses an exact reciprocal.
    np.testing.assert_allclose(np.asarray(out), np.asarray(ref), rtol=2e-2, atol=2e-2)

    print("KERNEL_OK")
</pallas_src>

<mosaic_0001>
module attributes {stable_mosaic.version = 11 : i64} {
  func.func @_att_kernel(%arg0: i32, %arg1: memref<8x32xf32, #tpu.memory_space<vmem>>, %arg2: memref<32x32xbf16, #tpu.memory_space<vmem>>, %arg3: memref<1x32xf32, #tpu.memory_space<vmem>>, %arg4: memref<32x32xbf16, #tpu.memory_space<vmem>>, %arg5: memref<1x32xf32, #tpu.memory_space<vmem>>, %arg6: memref<32x32xbf16, #tpu.memory_space<vmem>>, %arg7: memref<1x32xf32, #tpu.memory_space<vmem>>, %arg8: memref<32x32xbf16, #tpu.memory_space<vmem>>, %arg9: memref<1x32xf32, #tpu.memory_space<vmem>>, %arg10: memref<8x32xf32, #tpu.memory_space<vmem>>) attributes {dimension_semantics = [#tpu.dimension_semantics<parallel>], iteration_bounds = array<i64: 2>, scalar_prefetch = 0 : i64, scratch_operands = 0 : i64, tpu.core_type = #tpu.core_type<tc>, window_params = [{transform_indices = @transform_0, window_bounds = array<i64: 8, 32>}, {pipeline_mode = #tpu.pipeline_mode<synchronous>, transform_indices = @transform_1, window_bounds = array<i64: 32, 32>}, {pipeline_mode = #tpu.pipeline_mode<synchronous>, transform_indices = @transform_2, window_bounds = array<i64: 1, 32>}, {pipeline_mode = #tpu.pipeline_mode<synchronous>, transform_indices = @transform_3, window_bounds = array<i64: 32, 32>}, {pipeline_mode = #tpu.pipeline_mode<synchronous>, transform_indices = @transform_4, window_bounds = array<i64: 1, 32>}, {pipeline_mode = #tpu.pipeline_mode<synchronous>, transform_indices = @transform_5, window_bounds = array<i64: 32, 32>}, {pipeline_mode = #tpu.pipeline_mode<synchronous>, transform_indices = @transform_6, window_bounds = array<i64: 1, 32>}, {pipeline_mode = #tpu.pipeline_mode<synchronous>, transform_indices = @transform_7, window_bounds = array<i64: 32, 32>}, {pipeline_mode = #tpu.pipeline_mode<synchronous>, transform_indices = @transform_8, window_bounds = array<i64: 1, 32>}, {transform_indices = @transform_9, window_bounds = array<i64: 8, 32>}]} {
    %c0 = arith.constant 0 : index
    %c0_0 = arith.constant 0 : index
    %0 = vector.load %arg1[%c0, %c0_0] : memref<8x32xf32, #tpu.memory_space<vmem>>, vector<8x32xf32>
    %1 = arith.truncf %0 : vector<8x32xf32> to vector<8x32xbf16>
    %c0_1 = arith.constant 0 : index
    %c0_2 = arith.constant 0 : index
    %2 = vector.load %arg2[%c0_1, %c0_2] : memref<32x32xbf16, #tpu.memory_space<vmem>>, vector<32x32xbf16>
    %cst = arith.constant dense<0.000000e+00> : vector<8x32xf32>
    %3 = tpu.matmul %1, %2, %cst {dimension_numbers = #tpu.dot_dimension_numbers<[1], [0], [0], [1], [0, 0, 1, 1], [], []>} : vector<8x32xbf16>, vector<32x32xbf16>, vector<8x32xf32> -> vector<8x32xf32>
    %c0_3 = arith.constant 0 : index
    %c0_4 = arith.constant 0 : index
    %4 = vector.load %arg3[%c0_3, %c0_4] : memref<1x32xf32, #tpu.memory_space<vmem>>, vector<1x32xf32>
    %5 = vector.broadcast %4 : vector<1x32xf32> to vector<8x32xf32>
    %6 = arith.addf %3, %5 : vector<8x32xf32>
    %7 = arith.truncf %6 : vector<8x32xf32> to vector<8x32xbf16>
    %c0_5 = arith.constant 0 : index
    %c0_6 = arith.constant 0 : index
    %8 = vector.load %arg4[%c0_5, %c0_6] : memref<32x32xbf16, #tpu.memory_space<vmem>>, vector<32x32xbf16>
    %cst_7 = arith.constant dense<0.000000e+00> : vector<8x32xf32>
    %9 = tpu.matmul %1, %8, %cst_7 {dimension_numbers = #tpu.dot_dimension_numbers<[1], [0], [0], [1], [0, 0, 1, 1], [], []>} : vector<8x32xbf16>, vector<32x32xbf16>, vector<8x32xf32> -> vector<8x32xf32>
    %c0_8 = arith.constant 0 : index
    %c0_9 = arith.constant 0 : index
    %10 = vector.load %arg5[%c0_8, %c0_9] : memref<1x32xf32, #tpu.memory_space<vmem>>, vector<1x32xf32>
    %11 = vector.broadcast %10 : vector<1x32xf32> to vector<8x32xf32>
    %12 = arith.addf %9, %11 : vector<8x32xf32>
    %13 = arith.truncf %12 : vector<8x32xf32> to vector<8x32xbf16>
    %c0_10 = arith.constant 0 : index
    %c0_11 = arith.constant 0 : index
    %14 = vector.load %arg6[%c0_10, %c0_11] : memref<32x32xbf16, #tpu.memory_space<vmem>>, vector<32x32xbf16>
    %cst_12 = arith.constant dense<0.000000e+00> : vector<8x32xf32>
    %15 = tpu.matmul %1, %14, %cst_12 {dimension_numbers = #tpu.dot_dimension_numbers<[1], [0], [0], [1], [0, 0, 1, 1], [], []>} : vector<8x32xbf16>, vector<32x32xbf16>, vector<8x32xf32> -> vector<8x32xf32>
    %c0_13 = arith.constant 0 : index
    %c0_14 = arith.constant 0 : index
    %16 = vector.load %arg7[%c0_13, %c0_14] : memref<1x32xf32, #tpu.memory_space<vmem>>, vector<1x32xf32>
    %17 = vector.broadcast %16 : vector<1x32xf32> to vector<8x32xf32>
    %18 = arith.addf %15, %17 : vector<8x32xf32>
    %19 = arith.truncf %18 : vector<8x32xf32> to vector<8x32xbf16>
    %20 = vector.extract_strided_slice %7 {offsets = [0, 0], sizes = [8, 8], strides = [1, 1]} : vector<8x32xbf16> to vector<8x8xbf16>
    %21 = vector.shape_cast %20 : vector<8x8xbf16> to vector<1x8x8xbf16>
    %22 = vector.extract_strided_slice %7 {offsets = [0, 8], sizes = [8, 8], strides = [1, 1]} : vector<8x32xbf16> to vector<8x8xbf16>
    %23 = vector.shape_cast %22 : vector<8x8xbf16> to vector<1x8x8xbf16>
    %24 = vector.extract_strided_slice %7 {offsets = [0, 16], sizes = [8, 8], strides = [1, 1]} : vector<8x32xbf16> to vector<8x8xbf16>
    %25 = vector.shape_cast %24 : vector<8x8xbf16> to vector<1x8x8xbf16>
    %26 = vector.extract_strided_slice %7 {offsets = [0, 24], sizes = [8, 8], strides = [1, 1]} : vector<8x32xbf16> to vector<8x8xbf16>
    %27 = vector.shape_cast %26 : vector<8x8xbf16> to vector<1x8x8xbf16>
    %28 = tpu.concatenate %21, %23, %25, %27 in 0 : vector<1x8x8xbf16>, vector<1x8x8xbf16>, vector<1x8x8xbf16>, vector<1x8x8xbf16> -> vector<4x8x8xbf16>
    %29 = vector.extract_strided_slice %13 {offsets = [0, 0], sizes = [8, 8], strides = [1, 1]} : vector<8x32xbf16> to vector<8x8xbf16>
    %30 = vector.shape_cast %29 : vector<8x8xbf16> to vector<1x8x8xbf16>
    %31 = vector.extract_strided_slice %13 {offsets = [0, 8], sizes = [8, 8], strides = [1, 1]} : vector<8x32xbf16> to vector<8x8xbf16>
    %32 = vector.shape_cast %31 : vector<8x8xbf16> to vector<1x8x8xbf16>
    %33 = vector.extract_strided_slice %13 {offsets = [0, 16], sizes = [8, 8], strides = [1, 1]} : vector<8x32xbf16> to vector<8x8xbf16>
    %34 = vector.shape_cast %33 : vector<8x8xbf16> to vector<1x8x8xbf16>
    %35 = vector.extract_strided_slice %13 {offsets = [0, 24], sizes = [8, 8], strides = [1, 1]} : vector<8x32xbf16> to vector<8x8xbf16>
    %36 = vector.shape_cast %35 : vector<8x8xbf16> to vector<1x8x8xbf16>
    %37 = tpu.concatenate %30, %32, %34, %36 in 0 : vector<1x8x8xbf16>, vector<1x8x8xbf16>, vector<1x8x8xbf16>, vector<1x8x8xbf16> -> vector<4x8x8xbf16>
    %38 = vector.extract_strided_slice %19 {offsets = [0, 0], sizes = [8, 8], strides = [1, 1]} : vector<8x32xbf16> to vector<8x8xbf16>
    %39 = vector.shape_cast %38 : vector<8x8xbf16> to vector<1x8x8xbf16>
    %40 = vector.extract_strided_slice %19 {offsets = [0, 8], sizes = [8, 8], strides = [1, 1]} : vector<8x32xbf16> to vector<8x8xbf16>
    %41 = vector.shape_cast %40 : vector<8x8xbf16> to vector<1x8x8xbf16>
    %42 = vector.extract_strided_slice %19 {offsets = [0, 16], sizes = [8, 8], strides = [1, 1]} : vector<8x32xbf16> to vector<8x8xbf16>
    %43 = vector.shape_cast %42 : vector<8x8xbf16> to vector<1x8x8xbf16>
    %44 = vector.extract_strided_slice %19 {offsets = [0, 24], sizes = [8, 8], strides = [1, 1]} : vector<8x32xbf16> to vector<8x8xbf16>
    %45 = vector.shape_cast %44 : vector<8x8xbf16> to vector<1x8x8xbf16>
    %46 = tpu.concatenate %39, %41, %43, %45 in 0 : vector<1x8x8xbf16>, vector<1x8x8xbf16>, vector<1x8x8xbf16>, vector<1x8x8xbf16> -> vector<4x8x8xbf16>
    "tpu.trace_start"() <{level = 10 : i32, message = "bqd,bkd->bqk"}> : () -> ()
    %cst_15 = arith.constant dense<0.000000e+00> : vector<4x8x8xf32>
    %47 = tpu.matmul %28, %37, %cst_15 {dimension_numbers = #tpu.dot_dimension_numbers<[2], [2], [1], [1], [0, 0, 0, 1, 1, 1], [0], [0]>} : vector<4x8x8xbf16>, vector<4x8x8xbf16>, vector<4x8x8xf32> -> vector<4x8x8xf32>
    "tpu.trace_stop"() : () -> ()
    %cst_16 = arith.constant dense<0xFF800000> : vector<4x8xf32>
    %48 = vector.multi_reduction <maximumf>, %47, %cst_16 [2] : vector<4x8x8xf32> to vector<4x8xf32>
    %49 = vector.shape_cast %48 : vector<4x8xf32> to vector<4x8x1xf32>
    %50 = vector.broadcast %49 : vector<4x8x1xf32> to vector<4x8x8xf32>
    %51 = arith.subf %47, %50 : vector<4x8x8xf32>
    %52 = math.exp %51 : vector<4x8x8xf32>
    %cst_17 = arith.constant dense<0.000000e+00> : vector<4x8xf32>
    %53 = vector.multi_reduction <add>, %52, %cst_17 [2] : vector<4x8x8xf32> to vector<4x8xf32>
    %54 = vector.shape_cast %53 : vector<4x8xf32> to vector<4x8x1xf32>
    %55 = arith.truncf %52 : vector<4x8x8xf32> to vector<4x8x8xbf16>
    "tpu.trace_start"() <{level = 10 : i32, message = "bqk,bkd->bqd"}> : () -> ()
    %cst_18 = arith.constant dense<0.000000e+00> : vector<4x8x8xf32>
    %56 = tpu.matmul %55, %46, %cst_18 {dimension_numbers = #tpu.dot_dimension_numbers<[2], [1], [1], [2], [0, 0, 0, 1, 1, 2], [0], [0]>} : vector<4x8x8xbf16>, vector<4x8x8xbf16>, vector<4x8x8xf32> -> vector<4x8x8xf32>
    "tpu.trace_stop"() : () -> ()
    %57 = tpu.reciprocal %54 : vector<4x8x1xf32> -> vector<4x8x1xf32>
    %58 = vector.broadcast %57 : vector<4x8x1xf32> to vector<4x8x8xf32>
    %59 = arith.mulf %56, %58 : vector<4x8x8xf32>
    %c0_19 = arith.constant 0 : index
    %c0_20 = arith.constant 0 : index
    %60 = vector.load %arg8[%c0_19, %c0_20] : memref<32x32xbf16, #tpu.memory_space<vmem>>, vector<32x32xbf16>
    %c0_21 = arith.constant 0 : index
    %c0_22 = arith.constant 0 : index
    %61 = vector.load %arg9[%c0_21, %c0_22] : memref<1x32xf32, #tpu.memory_space<vmem>>, vector<1x32xf32>
    %62 = vector.broadcast %61 : vector<1x32xf32> to vector<8x32xf32>
    %63 = arith.addf %0, %62 : vector<8x32xf32>
    %64 = vector.extract_strided_slice %59 {offsets = [0, 0, 0], sizes = [1, 8, 8], strides = [1, 1, 1]} : vector<4x8x8xf32> to vector<1x8x8xf32>
    %65 = vector.shape_cast %64 : vector<1x8x8xf32> to vector<8x8xf32>
    %66 = arith.truncf %65 : vector<8x8xf32> to vector<8x8xbf16>
    %67 = vector.extract_strided_slice %60 {offsets = [0, 0], sizes = [8, 32], strides = [1, 1]} : vector<32x32xbf16> to vector<8x32xbf16>
    %cst_23 = arith.constant dense<0.000000e+00> : vector<8x32xf32>
    %68 = tpu.matmul %66, %67, %cst_23 {dimension_numbers = #tpu.dot_dimension_numbers<[1], [0], [0], [1], [0, 0, 1, 1], [], []>} : vector<8x8xbf16>, vector<8x32xbf16>, vector<8x32xf32> -> vector<8x32xf32>
    %69 = arith.addf %63, %68 : vector<8x32xf32>
    %70 = vector.extract_strided_slice %59 {offsets = [1, 0, 0], sizes = [1, 8, 8], strides = [1, 1, 1]} : vector<4x8x8xf32> to vector<1x8x8xf32>
    %71 = vector.shape_cast %70 : vector<1x8x8xf32> to vector<8x8xf32>
    %72 = arith.truncf %71 : vector<8x8xf32> to vector<8x8xbf16>
    %73 = vector.extract_strided_slice %60 {offsets = [8, 0], sizes = [8, 32], strides = [1, 1]} : vector<32x32xbf16> to vector<8x32xbf16>
    %cst_24 = arith.constant dense<0.000000e+00> : vector<8x32xf32>
    %74 = tpu.matmul %72, %73, %cst_24 {dimension_numbers = #tpu.dot_dimension_numbers<[1], [0], [0], [1], [0, 0, 1, 1], [], []>} : vector<8x8xbf16>, vector<8x32xbf16>, vector<8x32xf32> -> vector<8x32xf32>
    %75 = arith.addf %69, %74 : vector<8x32xf32>
    %76 = vector.extract_strided_slice %59 {offsets = [2, 0, 0], sizes = [1, 8, 8], strides = [1, 1, 1]} : vector<4x8x8xf32> to vector<1x8x8xf32>
    %77 = vector.shape_cast %76 : vector<1x8x8xf32> to vector<8x8xf32>
    %78 = arith.truncf %77 : vector<8x8xf32> to vector<8x8xbf16>
    %79 = vector.extract_strided_slice %60 {offsets = [16, 0], sizes = [8, 32], strides = [1, 1]} : vector<32x32xbf16> to vector<8x32xbf16>
    %cst_25 = arith.constant dense<0.000000e+00> : vector<8x32xf32>
    %80 = tpu.matmul %78, %79, %cst_25 {dimension_numbers = #tpu.dot_dimension_numbers<[1], [0], [0], [1], [0, 0, 1, 1], [], []>} : vector<8x8xbf16>, vector<8x32xbf16>, vector<8x32xf32> -> vector<8x32xf32>
    %81 = arith.addf %75, %80 : vector<8x32xf32>
    %82 = vector.extract_strided_slice %59 {offsets = [3, 0, 0], sizes = [1, 8, 8], strides = [1, 1, 1]} : vector<4x8x8xf32> to vector<1x8x8xf32>
    %83 = vector.shape_cast %82 : vector<1x8x8xf32> to vector<8x8xf32>
    %84 = arith.truncf %83 : vector<8x8xf32> to vector<8x8xbf16>
    %85 = vector.extract_strided_slice %60 {offsets = [24, 0], sizes = [8, 32], strides = [1, 1]} : vector<32x32xbf16> to vector<8x32xbf16>
    %cst_26 = arith.constant dense<0.000000e+00> : vector<8x32xf32>
    %86 = tpu.matmul %84, %85, %cst_26 {dimension_numbers = #tpu.dot_dimension_numbers<[1], [0], [0], [1], [0, 0, 1, 1], [], []>} : vector<8x8xbf16>, vector<8x32xbf16>, vector<8x32xf32> -> vector<8x32xf32>
    %87 = arith.addf %81, %86 : vector<8x32xf32>
    %c0_27 = arith.constant 0 : index
    %c0_28 = arith.constant 0 : index
    %88 = vector.load %arg10[%c0_27, %c0_28] : memref<8x32xf32, #tpu.memory_space<vmem>>, vector<8x32xf32>
    tpu.vector_store %arg10[%c0_27, %c0_28], %87 {strides = array<i32>} : memref<8x32xf32, #tpu.memory_space<vmem>>, vector<8x32xf32>,
    return
  }
  func.func @transform_0(%arg0: i32) -> (i32, i32) {
    %c0_i32 = arith.constant 0 : i32
    %c0_i32_0 = arith.constant 0 : i32
    return %arg0, %c0_i32 : i32, i32
  }
  func.func @transform_1(%arg0: i32) -> (i32, i32) {
    %c0_i32 = arith.constant 0 : i32
    %c0_i32_0 = arith.constant 0 : i32
    %c0_i32_1 = arith.constant 0 : i32
    return %c0_i32, %c0_i32_0 : i32, i32
  }
  func.func @transform_2(%arg0: i32) -> (i32, i32) {
    %c0_i32 = arith.constant 0 : i32
    %c0_i32_0 = arith.constant 0 : i32
    %c0_i32_1 = arith.constant 0 : i32
    return %c0_i32, %c0_i32_0 : i32, i32
  }
  func.func @transform_3(%arg0: i32) -> (i32, i32) {
    %c0_i32 = arith.constant 0 : i32
    %c0_i32_0 = arith.constant 0 : i32
    %c0_i32_1 = arith.constant 0 : i32
    return %c0_i32, %c0_i32_0 : i32, i32
  }
  func.func @transform_4(%arg0: i32) -> (i32, i32) {
    %c0_i32 = arith.constant 0 : i32
    %c0_i32_0 = arith.constant 0 : i32
    %c0_i32_1 = arith.constant 0 : i32
    return %c0_i32, %c0_i32_0 : i32, i32
  }
  func.func @transform_5(%arg0: i32) -> (i32, i32) {
    %c0_i32 = arith.constant 0 : i32
    %c0_i32_0 = arith.constant 0 : i32
    %c0_i32_1 = arith.constant 0 : i32
    return %c0_i32, %c0_i32_0 : i32, i32
  }
  func.func @transform_6(%arg0: i32) -> (i32, i32) {
    %c0_i32 = arith.constant 0 : i32
    %c0_i32_0 = arith.constant 0 : i32
    %c0_i32_1 = arith.constant 0 : i32
    return %c0_i32, %c0_i32_0 : i32, i32
  }
  func.func @transform_7(%arg0: i32) -> (i32, i32) {
    %c0_i32 = arith.constant 0 : i32
    %c0_i32_0 = arith.constant 0 : i32
    %c0_i32_1 = arith.constant 0 : i32
    return %c0_i32, %c0_i32_0 : i32, i32
  }
  func.func @transform_8(%arg0: i32) -> (i32, i32) {
    %c0_i32 = arith.constant 0 : i32
    %c0_i32_0 = arith.constant 0 : i32
    %c0_i32_1 = arith.constant 0 : i32
    return %c0_i32, %c0_i32_0 : i32, i32
  }
  func.func @transform_9(%arg0: i32) -> (i32, i32) {
    %c0_i32 = arith.constant 0 : i32
    %c0_i32_0 = arith.constant 0 : i32
    return %arg0, %c0_i32 : i32, i32
  }
}

</mosaic_0001>

<llo_original>
// kernel: tpu_custom_call.1
$region0: #{tpu_custom_call.1}
  #allocation0 [shape = 'u32[]', space=smem, size = 0x4, offset = 0x4, fixed_abs, tag = 'smem constant byte address 0x4 - core index']
  #allocation1 [shape = 'u32[72,128]{1,0:T(1,128)}', space=vmem, size = 0x9000, scoped, tag = 'internal scratch']
  %s0 = inlined_call_operand.hbm [shape: f32[16,32], index: 0, kind: input, shape index: {}]
  %s1 = inlined_call_operand.hbm [shape: bf16[32,32], index: 1, kind: input, shape index: {}]
  %s2 = inlined_call_operand.vmem [shape: f32[1,32], index: 2, kind: input, shape index: {}]
  %s3 = inlined_call_operand.hbm [shape: bf16[32,32], index: 3, kind: input, shape index: {}]
  %s4 = inlined_call_operand.vmem [shape: f32[1,32], index: 4, kind: input, shape index: {}]
  %s5 = inlined_call_operand.hbm [shape: bf16[32,32], index: 5, kind: input, shape index: {}]
  %s6 = inlined_call_operand.vmem [shape: f32[1,32], index: 6, kind: input, shape index: {}]
  %s7 = inlined_call_operand.hbm [shape: bf16[32,32], index: 7, kind: input, shape index: {}]
  %s8 = inlined_call_operand.vmem [shape: f32[1,32], index: 8, kind: input, shape index: {}]
  %s9 = inlined_call_operand.hbm [shape: f32[16,32], index: 9, kind: output, shape index: {}]
  %s10 = sld [smem:[#allocation0]]
  $region89: #{tpu_custom_call.1} parent=0
    _
  %s12 = ssub.s32 1, %s10
  %s13 = scalar_select 0, %s12, %s10
  $region1: #{tpu_custom_call.1} parent=0
    #allocation2 [shape = 'u8[8192]{0}', space=vmem, size = 0x2000, scoped, tag = 'input window, operand 0']
    #allocation3 [shape = 's32[2]{0}', space=sflag, size = 0x8, scoped, tag = 'scoped memory for tpu_custom_call.1']
    #allocation4 [shape = 's32[2]{0}', space=sflag, size = 0x8, scoped, tag = 'scoped memory for tpu_custom_call.1']
    #allocation5 [shape = 'u8[8192]{0}', space=vmem, size = 0x2000, scoped, tag = 'input window, operand 1, single buffered']
    #allocation6 [shape = 's32[1]{0}', space=sflag, size = 0x4, scoped, tag = 'scoped memory for tpu_custom_call.1']
    #allocation7 [shape = 'u8[8192]{0}', space=vmem, size = 0x2000, scoped, tag = 'input window, operand 3, single buffered']
    #allocation8 [shape = 'u8[8192]{0}', space=vmem, size = 0x2000, scoped, tag = 'input window, operand 5, single buffered']
    #allocation9 [shape = 's32[1]{0}', space=sflag, size = 0x4, scoped, tag = 'scoped memory for tpu_custom_call.1']
    #allocation10 [shape = 'u8[8192]{0}', space=vmem, size = 0x2000, scoped, tag = 'input window, operand 7, single buffered']
    #allocation11 [shape = 'u8[8192]{0}', space=vmem, size = 0x2000, scoped, tag = 'output window, operand 0']
    %14 = vsyncpa [#allocation3], 0
    %s15 = scalar_lea.sflag [#allocation3], 1
    %16 = vsyncpa %s15, 0
    %17 = vsyncpa [#allocation6], 0
    %18 = vsyncpa [#allocation9], 0
    %19 = vsyncpa [#allocation4], 0
    %s20 = scalar_lea.sflag [#allocation4], 1
    %21 = vsyncpa %s20, 0
    loop: start=0, step=1, limit=4
    $region2: #{tpu_custom_call.1} parent=1 // loop_pre_header
      _
    $region3: #{tpu_custom_call.1} parent=1 // loop_header
      %s23 = sphi 0, %s27
      %p24 = scmp.ge.s32.totalorder %s23, 4
      %s33 = sphi 0, %s35
      %s36 = sphi 0, %s33
      %s37 = sphi 0, %s36
      %s53 = sphi 0, %s37
      %s57 = sphi 0, %s57
      %s59 = sphi 0, %s57
      %s60 = sphi 0, %s59
      %s74 = sphi 0, %s60
      %s78 = sphi 0, %s78
      %s80 = sphi 0, %s78
      %s81 = sphi 0, %s80
      %s95 = sphi 0, %s81
      %s99 = sphi 0, %s99
      %s101 = sphi 0, %s99
      %s102 = sphi 0, %s101
      %s116 = sphi 0, %s102
      %s120 = sphi 0, %s120
      %s122 = sphi 0, %s120
      %s123 = sphi 0, %s122
      %s137 = sphi 0, %s123
      %s141 = sphi 0, %s141
      %s143 = sphi 0, %s141
      %s144 = sphi 0, %s143
      %s158 = sphi 0, %s144
      %s162 = sphi 0, %s162
      %s164 = sphi 0, %s162
      %s165 = sphi 0, %s164
      %s179 = sphi 0, %s165
      %s183 = sphi 0, %s183
      %s185 = sphi 0, %s183
      %s186 = sphi 0, %s185
      %s200 = sphi 0, %s186
      %s204 = sphi 0, %s204
      %s206 = sphi 0, %s204
      %s207 = sphi 0, %s206
      %s221 = sphi 0, %s207
      %s227 = sphi 0, %s229
      %s230 = sphi 0, %s227
      %s231 = sphi 0, %s230
      %s247 = sphi 0, %s231
    $region4: #{tpu_custom_call.1} parent=1 // loop_header_branch
      %26 = sbr.rel (%p24) target = $region8
    $region5: #{tpu_custom_call.1} parent=1 // loop_body
      %s28 = ssub.s32 %s23, 1
      %s29 = ssub.s32 %s23, 2
      %s30 = sadd.s32 %s23, 1
      %s31 = ssub.s32 %s23, %s30
      %p32 = scmp.eq.s32.totalorder %s31, 0
      %s34 = sadd.s32 %s33, 1
      %s35 = scalar_select %p32, %s33, %s34
      %p38 = pneg %p32
      %p39 = scmp.eq.s32.totalorder %s23, 1
      %p40 = por %p38, %p39
      %p41 = scmp.ne.s32.totalorder %s33, %s36
      %p42 = scmp.eq.s32.totalorder %s23, 0
      %p43 = por %p41, %p42
      %p44 = scmp.ne.s32.totalorder %s33, %s36
      %p45 = scmp.eq.s32.totalorder %s28, 1
      %p46 = por %p44, %p45
      %p47 = scmp.ne.s32.totalorder %s36, %s37
      %p48 = scmp.eq.s32.totalorder %s28, 0
      %p49 = por %p47, %p48
      %p50 = scmp.ne.s32.totalorder %s36, %s37
      %p51 = scmp.eq.s32.totalorder %s29, 1
      %p52 = por %p50, %p51
      %p54 = scmp.ne.s32.totalorder %s37, %s53
      %p55 = scmp.eq.s32.totalorder %s29, 0
      %p56 = por %p54, %p55
      %s58 = sadd.s32 %s57, 1
      %p61 = scmp.eq.s32.totalorder %s23, 1
      %p62 = scmp.ne.s32.totalorder %s57, %s59
      %p63 = scmp.eq.s32.totalorder %s23, 0
      %p64 = por %p62, %p63
      %p65 = scmp.ne.s32.totalorder %s57, %s59
      %p66 = scmp.eq.s32.totalorder %s28, 1
      %p67 = por %p65, %p66
      %p68 = scmp.ne.s32.totalorder %s59, %s60
      %p69 = scmp.eq.s32.totalorder %s28, 0
      %p70 = por %p68, %p69
      %p71 = scmp.ne.s32.totalorder %s59, %s60
      %p72 = scmp.eq.s32.totalorder %s29, 1
      %p73 = por %p71, %p72
      %p75 = scmp.ne.s32.totalorder %s60, %s74
      %p76 = scmp.eq.s32.totalorder %s29, 0
      %p77 = por %p75, %p76
      %s79 = sadd.s32 %s78, 1
      %p82 = scmp.eq.s32.totalorder %s23, 1
      %p83 = scmp.ne.s32.totalorder %s78, %s80
      %p84 = scmp.eq.s32.totalorder %s23, 0
      %p85 = por %p83, %p84
      %p86 = scmp.ne.s32.totalorder %s78, %s80
      %p87 = scmp.eq.s32.totalorder %s28, 1
      %p88 = por %p86, %p87
      %p89 = scmp.ne.s32.totalorder %s80, %s81
      %p90 = scmp.eq.s32.totalorder %s28, 0
      %p91 = por %p89, %p90
      %p92 = scmp.ne.s32.totalorder %s80, %s81
      %p93 = scmp.eq.s32.totalorder %s29, 1
      %p94 = por %p92, %p93
      %p96 = scmp.ne.s32.totalorder %s81, %s95
      %p97 = scmp.eq.s32.totalorder %s29, 0
      %p98 = por %p96, %p97
      %s100 = sadd.s32 %s99, 1
      %p103 = scmp.eq.s32.totalorder %s23, 1
      %p104 = scmp.ne.s32.totalorder %s99, %s101
      %p105 = scmp.eq.s32.totalorder %s23, 0
      %p106 = por %p104, %p105
      %p107 = scmp.ne.s32.totalorder %s99, %s101
      %p108 = scmp.eq.s32.totalorder %s28, 1
      %p109 = por %p107, %p108
      %p110 = scmp.ne.s32.totalorder %s101, %s102
      %p111 = scmp.eq.s32.totalorder %s28, 0
      %p112 = por %p110, %p111
      %p113 = scmp.ne.s32.totalorder %s101, %s102
      %p114 = scmp.eq.s32.totalorder %s29, 1
      %p115 = por %p113, %p114
      %p117 = scmp.ne.s32.totalorder %s102, %s116
      %p118 = scmp.eq.s32.totalorder %s29, 0
      %p119 = por %p117, %p118
      %s121 = sadd.s32 %s120, 1
      %p124 = scmp.eq.s32.totalorder %s23, 1
      %p125 = scmp.ne.s32.totalorder %s120, %s122
      %p126 = scmp.eq.s32.totalorder %s23, 0
      %p127 = por %p125, %p126
      %p128 = scmp.ne.s32.totalorder %s120, %s122
      %p129 = scmp.eq.s32.totalorder %s28, 1
      %p130 = por %p128, %p129
      %p131 = scmp.ne.s32.totalorder %s122, %s123
      %p132 = scmp.eq.s32.totalorder %s28, 0
      %p133 = por %p131, %p132
      %p134 = scmp.ne.s32.totalorder %s122, %s123
      %p135 = scmp.eq.s32.totalorder %s29, 1
      %p136 = por %p134, %p135
      %p138 = scmp.ne.s32.totalorder %s123, %s137
      %p139 = scmp.eq.s32.totalorder %s29, 0
      %p140 = por %p138, %p139
      %s142 = sadd.s32 %s141, 1
      %p145 = scmp.eq.s32.totalorder %s23, 1
      %p146 = scmp.ne.s32.totalorder %s141, %s143
      %p147 = scmp.eq.s32.totalorder %s23, 0
      %p148 = por %p146, %p147
      %p149 = scmp.ne.s32.totalorder %s141, %s143
      %p150 = scmp.eq.s32.totalorder %s28, 1
      %p151 = por %p149, %p150
      %p152 = scmp.ne.s32.totalorder %s143, %s144
      %p153 = scmp.eq.s32.totalorder %s28, 0
      %p154 = por %p152, %p153
      %p155 = scmp.ne.s32.totalorder %s143, %s144
      %p156 = scmp.eq.s32.totalorder %s29, 1
      %p157 = por %p155, %p156
      %p159 = scmp.ne.s32.totalorder %s144, %s158
      %p160 = scmp.eq.s32.totalorder %s29, 0
      %p161 = por %p159, %p160
      %s163 = sadd.s32 %s162, 1
      %p166 = scmp.eq.s32.totalorder %s23, 1
      %p167 = scmp.ne.s32.totalorder %s162, %s164
      %p168 = scmp.eq.s32.totalorder %s23, 0
      %p169 = por %p167, %p168
      %p170 = scmp.ne.s32.totalorder %s162, %s164
      %p171 = scmp.eq.s32.totalorder %s28, 1
      %p172 = por %p170, %p171
      %p173 = scmp.ne.s32.totalorder %s164, %s165
      %p174 = scmp.eq.s32.totalorder %s28, 0
      %p175 = por %p173, %p174
      %p176 = scmp.ne.s32.totalorder %s164, %s165
      %p177 = scmp.eq.s32.totalorder %s29, 1
      %p178 = por %p176, %p177
      %p180 = scmp.ne.s32.totalorder %s165, %s179
      %p181 = scmp.eq.s32.totalorder %s29, 0
      %p182 = por %p180, %p181
      %s184 = sadd.s32 %s183, 1
      %p187 = scmp.eq.s32.totalorder %s23, 1
      %p188 = scmp.ne.s32.totalorder %s183, %s185
      %p189 = scmp.eq.s32.totalorder %s23, 0
      %p190 = por %p188, %p189
      %p191 = scmp.ne.s32.totalorder %s183, %s185
      %p192 = scmp.eq.s32.totalorder %s28, 1
      %p193 = por %p191, %p192
      %p194 = scmp.ne.s32.totalorder %s185, %s186
      %p195 = scmp.eq.s32.totalorder %s28, 0
      %p196 = por %p194, %p195
      %p197 = scmp.ne.s32.totalorder %s185, %s186
      %p198 = scmp.eq.s32.totalorder %s29, 1
      %p199 = por %p197, %p198
      %p201 = scmp.ne.s32.totalorder %s186, %s200
      %p202 = scmp.eq.s32.totalorder %s29, 0
      %p203 = por %p201, %p202
      %s205 = sadd.s32 %s204, 1
      %p208 = scmp.eq.s32.totalorder %s23, 1
      %p209 = scmp.ne.s32.totalorder %s204, %s206
      %p210 = scmp.eq.s32.totalorder %s23, 0
      %p211 = por %p209, %p210
      %p212 = scmp.ne.s32.totalorder %s204, %s206
      %p213 = scmp.eq.s32.totalorder %s28, 1
      %p214 = por %p212, %p213
      %p215 = scmp.ne.s32.totalorder %s206, %s207
      %p216 = scmp.eq.s32.totalorder %s28, 0
      %p217 = por %p215, %p216
      %p218 = scmp.ne.s32.totalorder %s206, %s207
      %p219 = scmp.eq.s32.totalorder %s29, 1
      %p220 = por %p218, %p219
      %p222 = scmp.ne.s32.totalorder %s207, %s221
      %p223 = scmp.eq.s32.totalorder %s29, 0
      %p224 = por %p222, %p223
      %s225 = ssub.s32 %s23, %s30
      %p226 = scmp.eq.s32.totalorder %s225, 0
      %s228 = sadd.s32 %s227, 1
      %s229 = scalar_select %p226, %s227, %s228
      %p232 = pneg %p226
      %p233 = scmp.eq.s32.totalorder %s23, 1
      %p234 = por %p232, %p233
      %p235 = scmp.ne.s32.totalorder %s227, %s230
      %p236 = scmp.eq.s32.totalorder %s23, 0
      %p237 = por %p235, %p236
      %p238 = scmp.ne.s32.totalorder %s227, %s230
      %p239 = scmp.eq.s32.totalorder %s28, 1
      %p240 = por %p238, %p239
      %p241 = scmp.ne.s32.totalorder %s230, %s231
      %p242 = scmp.eq.s32.totalorder %s28, 0
      %p243 = por %p241, %p242
      %p244 = scmp.ne.s32.totalorder %s230, %s231
      %p245 = scmp.eq.s32.totalorder %s29, 1
      %p246 = por %p244, %p245
      %p248 = scmp.ne.s32.totalorder %s231, %s247
      %p249 = scmp.eq.s32.totalorder %s29, 0
      %p250 = por %p248, %p249
      %p251 = scmp.le.s32.totalorder 1, %s23
      %p252 = scmp.lt.s32.totalorder %s23, 3
      %p253 = pnand %p251, %p252
      %p254 = pneg %p253
      // Predicated region
      $region9: #{tpu_custom_call.1} parent=5 // pred_check
        _
      $region10: #{tpu_custom_call.1} parent=5 // pred_check_branch
        %256 = sbr.rel (%p253) target = $region12
      $region11: #{tpu_custom_call.1} parent=5 // pred_region
        %s257 = ssub.s32 %s23, 1
        // Predicated region
        $region13: #{tpu_custom_call.1} parent=11 // pred_check
          %p258 = pneg %p70
        $region14: #{tpu_custom_call.1} parent=11 // pred_check_branch
          %260 = sbr.rel (%p258) target = $region16
        $region15: #{tpu_custom_call.1} parent=11 // pred_region
          %262 = vsyncadd [#allocation6], 0
          %s263 = sshll.u32 %s1, 4
          %s264 = int_to_ptr.hbm [resolvable:$true] %s263
          %s265 = sshll.u32 [#allocation5], 4
          %s266 = int_to_ptr.vmem [resolvable:$true] %s265
          %271 = dma.hbm_to_vmem [thread:$0]  %s264, 256, %s266, [#allocation6], 64, 64, 4
        $region16: #{tpu_custom_call.1} parent=11 // pred_fallthru
          _
        // Predicated region
        $region17: #{tpu_custom_call.1} parent=11 // pred_check
          %p272 = pneg %p91
        $region18: #{tpu_custom_call.1} parent=11 // pred_check_branch
          %274 = sbr.rel (%p272) target = $region20
        $region19: #{tpu_custom_call.1} parent=11 // pred_region
          _
        $region20: #{tpu_custom_call.1} parent=11 // pred_fallthru
          _
        // Predicated region
        $region21: #{tpu_custom_call.1} parent=11 // pred_check
          %p275 = pneg %p112
        $region22: #{tpu_custom_call.1} parent=11 // pred_check_branch
          %277 = sbr.rel (%p275) target = $region24
        $region23: #{tpu_custom_call.1} parent=11 // pred_region
          %279 = vsyncadd [#allocation6], 0
          %s280 = sshll.u32 %s3, 4
          %s281 = int_to_ptr.hbm [resolvable:$true] %s280
          %s282 = sshll.u32 [#allocation7], 4
          %s283 = int_to_ptr.vmem [resolvable:$true] %s282
          %288 = dma.hbm_to_vmem [thread:$0]  %s281, 256, %s283, [#allocation6], 64, 64, 4
        $region24: #{tpu_custom_call.1} parent=11 // pred_fallthru
          _
        // Predicated region
        $region25: #{tpu_custom_call.1} parent=11 // pred_check
          %p289 = pneg %p133
        $region26: #{tpu_custom_call.1} parent=11 // pred_check_branch
          %291 = sbr.rel (%p289) target = $region28
        $region27: #{tpu_custom_call.1} parent=11 // pred_region
          _
        $region28: #{tpu_custom_call.1} parent=11 // pred_fallthru
          _
        // Predicated region
        $region29: #{tpu_custom_call.1} parent=11 // pred_check
          %p292 = pneg %p154
        $region30: #{tpu_custom_call.1} parent=11 // pred_check_branch
          %294 = sbr.rel (%p292) target = $region32
        $region31: #{tpu_custom_call.1} parent=11 // pred_region
          %296 = vsyncadd [#allocation9], 0
          %s297 = sshll.u32 %s5, 4
          %s298 = int_to_ptr.hbm [resolvable:$true] %s297
          %s299 = sshll.u32 [#allocation8], 4
          %s300 = int_to_ptr.vmem [resolvable:$true] %s299
          %305 = dma.hbm_to_vmem [thread:$0]  %s298, 256, %s300, [#allocation9], 64, 64, 4
        $region32: #{tpu_custom_call.1} parent=11 // pred_fallthru
          _
        // Predicated region
        $region33: #{tpu_custom_call.1} parent=11 // pred_check
          %p306 = pneg %p175
        $region34: #{tpu_custom_call.1} parent=11 // pred_check_branch
          %308 = sbr.rel (%p306) target = $region36
        $region35: #{tpu_custom_call.1} parent=11 // pred_region
          _
        $region36: #{tpu_custom_call.1} parent=11 // pred_fallthru
          _
        // Predicated region
        $region37: #{tpu_custom_call.1} parent=11 // pred_check
          %p309 = pneg %p196
        $region38: #{tpu_custom_call.1} parent=11 // pred_check_branch
          %311 = sbr.rel (%p309) target = $region40
        $region39: #{tpu_custom_call.1} parent=11 // pred_region
          %313 = vsyncadd [#allocation9], 0
          %s314 = sshll.u32 %s7, 4
          %s315 = int_to_ptr.hbm [resolvable:$true] %s314
          %s316 = sshll.u32 [#allocation10], 4
          %s317 = int_to_ptr.vmem [resolvable:$true] %s316
          %322 = dma.hbm_to_vmem [thread:$0]  %s315, 256, %s317, [#allocation9], 64, 64, 4
        $region40: #{tpu_custom_call.1} parent=11 // pred_fallthru
          _
        // Predicated region
        $region41: #{tpu_custom_call.1} parent=11 // pred_check
          %p323 = pneg %p217
        $region42: #{tpu_custom_call.1} parent=11 // pred_check_branch
          %325 = sbr.rel (%p323) target = $region44
        $region43: #{tpu_custom_call.1} parent=11 // pred_region
          _
        $region44: #{tpu_custom_call.1} parent=11 // pred_fallthru
          _
      $region12: #{tpu_custom_call.1} parent=5 // pred_fallthru
        _
      %p326 = scmp.lt.s32.totalorder %s23, 2
      // Predicated region
      $region45: #{tpu_custom_call.1} parent=5 // pred_check
        %p327 = pneg %p326
      $region46: #{tpu_custom_call.1} parent=5 // pred_check_branch
        %329 = sbr.rel (%p327) target = $region48
      $region47: #{tpu_custom_call.1} parent=5 // pred_region
        // Predicated region
        $region49: #{tpu_custom_call.1} parent=47 // pred_check
          %p330 = pneg %p43
        $region50: #{tpu_custom_call.1} parent=47 // pred_check_branch
          %332 = sbr.rel (%p330) target = $region52
        $region51: #{tpu_custom_call.1} parent=47 // pred_region
          %s333 = sand.u32 %s33, 1
          %s334 = scalar_lea.sflag [#allocation3], %s333
          %s335 = sand.u32 %s33, 1
          %s336 = smul.addr %s335, 8
          %s337 = scalar_lea.vmem [#allocation2], %s336
          %339 = vsyncadd %s334, 0
          %s340 = smul.addr %s23, 8
          %s341 = scalar_lea.hbm %s0, %s340
          %s343 = sshll.u32 %s341, 4
          %s344 = int_to_ptr.hbm [resolvable:$true] %s343
          %s345 = sshll.u32 %s337, 4
          %s346 = int_to_ptr.vmem [resolvable:$true] %s345
          %348 = dma.hbm_to_vmem [thread:$0]  %s344, 128, %s346, %s334
        $region52: #{tpu_custom_call.1} parent=47 // pred_fallthru
          _
      $region48: #{tpu_custom_call.1} parent=5 // pred_fallthru
        _
      %p349 = scmp.le.s32.totalorder 1, %s23
      %p350 = scmp.lt.s32.totalorder %s23, 3
      %p351 = pnand %p349, %p350
      %p352 = pneg %p351
      // Predicated region
      $region53: #{tpu_custom_call.1} parent=5 // pred_check
        _
      $region54: #{tpu_custom_call.1} parent=5 // pred_check_branch
        %354 = sbr.rel (%p351) target = $region56
      $region55: #{tpu_custom_call.1} parent=5 // pred_region
        %s355 = ssub.s32 %s23, 1
        %s356 = sand.u32 %s36, 1
        %s357 = scalar_lea.sflag [#allocation3], %s356
        %s358 = sand.u32 %s36, 1
        %s359 = smul.addr %s358, 8
        %s360 = scalar_lea.vmem [#allocation2], %s359
        // Predicated region
        $region57: #{tpu_custom_call.1} parent=55 // pred_check
          %p361 = pneg %p49
        $region58: #{tpu_custom_call.1} parent=55 // pred_check_branch
          %363 = sbr.rel (%p361) target = $region60
        $region59: #{tpu_custom_call.1} parent=55 // pred_region
          %365 = dma.done %s357, 128
        $region60: #{tpu_custom_call.1} parent=55 // pred_fallthru
          _
        // Predicated region
        $region61: #{tpu_custom_call.1} parent=55 // pred_check
          %p366 = pneg %p70
        $region62: #{tpu_custom_call.1} parent=55 // pred_check_branch
          %368 = sbr.rel (%p366) target = $region64
        $region63: #{tpu_custom_call.1} parent=55 // pred_region
          %370 = dma.done [#allocation6], 256
        $region64: #{tpu_custom_call.1} parent=55 // pred_fallthru
          _
        // Predicated region
        $region65: #{tpu_custom_call.1} parent=55 // pred_check
          %p371 = pneg %p112
        $region66: #{tpu_custom_call.1} parent=55 // pred_check_branch
          %373 = sbr.rel (%p371) target = $region68
        $region67: #{tpu_custom_call.1} parent=55 // pred_region
          %375 = dma.done [#allocation6], 256
        $region68: #{tpu_custom_call.1} parent=55 // pred_fallthru
          _
        // Predicated region
        $region69: #{tpu_custom_call.1} parent=55 // pred_check
          %p376 = pneg %p154
        $region70: #{tpu_custom_call.1} parent=55 // pred_check_branch
          %378 = sbr.rel (%p376) target = $region72
        $region71: #{tpu_custom_call.1} parent=55 // pred_region
          %380 = dma.done [#allocation9], 256
        $region72: #{tpu_custom_call.1} parent=55 // pred_fallthru
          _
        // Predicated region
        $region73: #{tpu_custom_call.1} parent=55 // pred_check
          %p381 = pneg %p196
        $region74: #{tpu_custom_call.1} parent=55 // pred_check_branch
          %383 = sbr.rel (%p381) target = $region76
        $region75: #{tpu_custom_call.1} parent=55 // pred_region
          %385 = dma.done [#allocation9], 256
        $region76: #{tpu_custom_call.1} parent=55 // pred_fallthru
          _
        %s386 = sand.u32 %s36, 1
        %s387 = scalar_lea.sflag [#allocation3], %s386
        %s388 = sand.u32 %s36, 1
        %s389 = smul.addr %s388, 8
        %s390 = scalar_lea.vmem [#allocation2], %s389
        %p391 = pneg %p49
        %p392 = pneg %p46
        %p393 = pneg %p70
        %p394 = pneg %p67
        %p395 = pneg %p91
        %p396 = pneg %p88
        %p397 = pneg %p112
        %p398 = pneg %p109
        %p399 = pneg %p133
        %p400 = pneg %p130
        %p401 = pneg %p154
        %p402 = pneg %p151
        %p403 = pneg %p175
        %p404 = pneg %p172
        %p405 = pneg %p196
        %p406 = pneg %p193
        %p407 = pneg %p217
        %p408 = pneg %p214
        %p409 = pneg %p243
        %p410 = pneg %p240
        %s411 = sand.u32 %s230, 1
        %s412 = scalar_lea.sflag [#allocation4], %s411
        %s413 = sand.u32 %s230, 1
        %s414 = smul.addr %s413, 8
        %s415 = scalar_lea.vmem [#allocation11], %s414
        %v417 = vld [vmem:[%s360] sm:$0xff]
        %v418 = vpack.c.bf16 %v417, %v417
        %v419 = vld [vmem:[#allocation5] sm:$0xf]
        %v420 = vld [vmem:[#allocation5 + $0x4] sm:$0xf]
        %v421 = vld [vmem:[#allocation5 + $0x8] sm:$0xf]
        %v422 = vld [vmem:[#allocation5 + $0xc] sm:$0xf]
        %v423 = vld [vmem:[%s2] sm:$0x1]
        %v425 = vperm.slane %v423, 0
        %v431 = vunpack.c.l.b16 %v419
        %v432 = vunpack.c.l.b16 %v420
        %v433 = vunpack.c.l.b16 %v421
        %v434 = vunpack.c.l.b16 %v422
        %v435 = vpack.c.b16 %v432, %v431
        %v436 = vpack.c.b16 %v434, %v433
        %vm439 = vcmask 261120
        %v441 = vsel %vm439, %v418, 0
        %443 = vmatpush.bf16.msra.mxu0 0
        %444 = vmatpush.bf16.msra.mxu0 0
        %445 = vmatpush.bf16.msra.mxu0 0
        %446 = vmatpush.bf16.msra.mxu0 0
        %447 = vmatpush.bf16.msra.mxu0 0
        %448 = vmatpush.bf16.msra.mxu0 0
        %449 = vmatpush.bf16.msra.mxu0 %v436
        %450 = vmatpush.bf16.msra.mxu0 %v435
        %451 = vmatmul.bf16.gmra.mxu0 %v441
        %v452 = vpop.f32.mrf.mxu0
        %v453 = vadd.f32 %v425, %v452
        %v454 = vpop.f32.mrf.mxu0
        %455 = vdwg.mxu0
        %v456 = vpack.c.bf16 %v453, %v453
        %v457 = vld [vmem:[#allocation7] sm:$0xf]
        %v458 = vld [vmem:[#allocation7 + $0x4] sm:$0xf]
        %v459 = vld [vmem:[#allocation7 + $0x8] sm:$0xf]
        %v460 = vld [vmem:[#allocation7 + $0xc] sm:$0xf]
        %v461 = vld [vmem:[%s4] sm:$0x1]
        %v463 = vperm.slane %v461, 0
        %v469 = vunpack.c.l.b16 %v457
        %v470 = vunpack.c.l.b16 %v458
        %v471 = vunpack.c.l.b16 %v459
        %v472 = vunpack.c.l.b16 %v460
        %v473 = vpack.c.b16 %v470, %v469
        %v474 = vpack.c.b16 %v472, %v471
        %477 = vmatpush.bf16.msra.mxu0 0
        %478 = vmatpush.bf16.msra.mxu0 0
        %479 = vmatpush.bf16.msra.mxu0 0
        %480 = vmatpush.bf16.msra.mxu0 0
        %481 = vmatpush.bf16.msra.mxu0 0
        %482 = vmatpush.bf16.msra.mxu0 0
        %483 = vmatpush.bf16.msra.mxu0 %v474
        %484 = vmatpush.bf16.msra.mxu0 %v473
        %485 = vmatmul.bf16.gmra.mxu0 %v441
        %v486 = vpop.f32.mrf.mxu0
        %v487 = vadd.f32 %v463, %v486
        %v488 = vpop.f32.mrf.mxu0
        %489 = vdwg.mxu0
        %v490 = vpack.c.bf16 %v487, %v487
        %v491 = vld [vmem:[#allocation8] sm:$0xf]
        %v492 = vld [vmem:[#allocation8 + $0x4] sm:$0xf]
        %v493 = vld [vmem:[#allocation8 + $0x8] sm:$0xf]
        %v494 = vld [vmem:[#allocation8 + $0xc] sm:$0xf]
        %v495 = vld [vmem:[%s6] sm:$0x1]
        %v497 = vperm.slane %v495, 0
        %v503 = vunpack.c.l.b16 %v491
        %v504 = vunpack.c.l.b16 %v492
        %v505 = vunpack.c.l.b16 %v493
        %v506 = vunpack.c.l.b16 %v494
        %v507 = vpack.c.b16 %v504, %v503
        %v508 = vpack.c.b16 %v506, %v505
        %511 = vmatpush.bf16.msra.mxu0 0
        %512 = vmatpush.bf16.msra.mxu0 0
        %513 = vmatpush.bf16.msra.mxu0 0
        %514 = vmatpush.bf16.msra.mxu0 0
        %515 = vmatpush.bf16.msra.mxu0 0
        %516 = vmatpush.bf16.msra.mxu0 0
        %517 = vmatpush.bf16.msra.mxu0 %v508
        %518 = vmatpush.bf16.msra.mxu0 %v507
        %519 = vmatmul.bf16.gmra.mxu0 %v441
        %v520 = vpop.f32.mrf.mxu0
        %v521 = vadd.f32 %v497, %v520
        %v522 = vpop.f32.mrf.mxu0
        %523 = vdwg.mxu0
        %v524 = vpack.c.bf16 %v521, %v521
        %526 = vrot.lane.b32.xlu0 %v456, 120
        %v527 = vpop.permute.xlu0 %526
        %528 = vrot.lane.b32.xlu0 %v456, 112
        %v529 = vpop.permute.xlu0 %528
        %530 = vrot.lane.b32.xlu0 %v456, 104
        %v531 = vpop.permute.xlu0 %530
        %533 = vrot.lane.b32.xlu0 %v490, 120
        %v534 = vpop.permute.xlu0 %533
        %535 = vrot.lane.b32.xlu0 %v490, 112
        %v536 = vpop.permute.xlu0 %535
        %537 = vrot.lane.b32.xlu0 %v490, 104
        %v538 = vpop.permute.xlu0 %537
        %540 = vrot.lane.b32.xlu0 %v524, 120
        %v541 = vpop.permute.xlu0 %540
        %542 = vrot.lane.b32.xlu0 %v524, 112
        %v543 = vpop.permute.xlu0 %542
        %544 = vrot.lane.b32.xlu0 %v524, 104
        %v545 = vpop.permute.xlu0 %544
        %vm546 = vcmask 64512
        %v548 = vsel %vm546, %v456, 0
        %v551 = vsel %vm546, %v490, 0
        %553 = vmatpush.bf16.xpose.msra.mxu0 0
        %554 = vmatpush.bf16.xpose.msra.mxu0 0
        %555 = vmatpush.bf16.xpose.msra.mxu0 0
        %556 = vmatpush.bf16.xpose.msra.mxu0 0
        %557 = vmatpush.bf16.xpose.msra.mxu0 0
        %558 = vmatpush.bf16.xpose.msra.mxu0 0
        %559 = vmatpush.bf16.xpose.msra.mxu0 0
        %560 = vmatpush.bf16.xpose.msra.mxu0 %v551
        %561 = vmatmul.bf16.gmra.mxu0 %v548
        %v562 = vpop.f32.mrf.mxu0
        %v563 = vadd.f32 0.0, %v562
        %v564 = vpop.f32.mrf.mxu0
        %565 = vdwg.mxu0
        %v567 = vsel %vm546, %v527, 0
        %v570 = vsel %vm546, %v534, 0
        %572 = vmatpush.bf16.xpose.msra.mxu0 0
        %573 = vmatpush.bf16.xpose.msra.mxu0 0
        %574 = vmatpush.bf16.xpose.msra.mxu0 0
        %575 = vmatpush.bf16.xpose.msra.mxu0 0
        %576 = vmatpush.bf16.xpose.msra.mxu0 0
        %577 = vmatpush.bf16.xpose.msra.mxu0 0
        %578 = vmatpush.bf16.xpose.msra.mxu0 0
        %579 = vmatpush.bf16.xpose.msra.mxu0 %v570
        %580 = vmatmul.bf16.gmra.mxu0 %v567
        %v581 = vpop.f32.mrf.mxu0
        %v582 = vadd.f32 0.0, %v581
        %v583 = vpop.f32.mrf.mxu0
        %584 = vdwg.mxu0
        %v586 = vsel %vm546, %v529, 0
        %v589 = vsel %vm546, %v536, 0
        %591 = vmatpush.bf16.xpose.msra.mxu0 0
        %592 = vmatpush.bf16.xpose.msra.mxu0 0
        %593 = vmatpush.bf16.xpose.msra.mxu0 0
        %594 = vmatpush.bf16.xpose.msra.mxu0 0
        %595 = vmatpush.bf16.xpose.msra.mxu0 0
        %596 = vmatpush.bf16.xpose.msra.mxu0 0
        %597 = vmatpush.bf16.xpose.msra.mxu0 0
        %598 = vmatpush.bf16.xpose.msra.mxu0 %v589
        %599 = vmatmul.bf16.gmra.mxu0 %v586
        %v600 = vpop.f32.mrf.mxu0
        %v601 = vadd.f32 0.0, %v600
        %v602 = vpop.f32.mrf.mxu0
        %603 = vdwg.mxu0
        %v605 = vsel %vm546, %v531, 0
        %v608 = vsel %vm546, %v538, 0
        %610 = vmatpush.bf16.xpose.msra.mxu0 0
        %611 = vmatpush.bf16.xpose.msra.mxu0 0
        %612 = vmatpush.bf16.xpose.msra.mxu0 0
        %613 = vmatpush.bf16.xpose.msra.mxu0 0
        %614 = vmatpush.bf16.xpose.msra.mxu0 0
        %615 = vmatpush.bf16.xpose.msra.mxu0 0
        %616 = vmatpush.bf16.xpose.msra.mxu0 0
        %617 = vmatpush.bf16.xpose.msra.mxu0 %v608
        %618 = vmatmul.bf16.gmra.mxu0 %v605
        %v619 = vpop.f32.mrf.mxu0
        %v620 = vadd.f32 0.0, %v619
        %v621 = vpop.f32.mrf.mxu0
        %622 = vdwg.mxu0
        %v623 = vsel %vm546, %v563, -inf
        %624 = vmax.xlane.f32.xlu0 %v623
        %v625 = vpop.xlane.xlu0 %624
        %v626 = vsel %vm546, %v582, -inf
        %627 = vmax.xlane.f32.xlu0 %v626
        %v628 = vpop.xlane.xlu0 %627
        %v629 = vsel %vm546, %v601, -inf
        %630 = vmax.xlane.f32.xlu0 %v629
        %v631 = vpop.xlane.xlu0 %630
        %v632 = vsel %vm546, %v620, -inf
        %633 = vmax.xlane.f32.xlu0 %v632
        %v634 = vpop.xlane.xlu0 %633
        %v635 = vsub.f32 %v563, %v625
        %v636 = vsub.f32 %v582, %v628
        %v637 = vsub.f32 %v601, %v631
        %v638 = vsub.f32 %v620, %v634
        %v639 = vmul.f32 %v635, 1.442695
        %v640 = vpow.pop %v639
        %v641 = vmul.f32 %v636, 1.442695
        %v642 = vpow.pop %v641
        %v643 = vmul.f32 %v637, 1.442695
        %v644 = vpow.pop %v643
        %v645 = vmul.f32 %v638, 1.442695
        %v646 = vpow.pop %v645
        %v647 = vsel %vm546, %v640, 0.0
        %648 = vadd.xlane.f32.xlu0 %v647
        %v649 = vpop.xlane.xlu0 %648
        %v650 = vsel %vm546, %v642, 0.0
        %651 = vadd.xlane.f32.xlu0 %v650
        %v652 = vpop.xlane.xlu0 %651
        %v653 = vsel %vm546, %v644, 0.0
        %654 = vadd.xlane.f32.xlu0 %v653
        %v655 = vpop.xlane.xlu0 %654
        %v656 = vsel %vm546, %v646, 0.0
        %657 = vadd.xlane.f32.xlu0 %v656
        %v658 = vpop.xlane.xlu0 %657
        %v659 = vpack.c.bf16 %v640, %v640
        %v660 = vpack.c.bf16 %v642, %v642
        %v661 = vpack.c.bf16 %v644, %v644
        %v662 = vpack.c.bf16 %v646, %v646
        %v664 = vsel %vm546, %v659, 0
        %vm666 = vcmask 1043456
        %v668 = vsel %vm666, %v524, 0
        %670 = vmatpush.bf16.msra.mxu0 0
        %671 = vmatpush.bf16.msra.mxu0 0
        %672 = vmatpush.bf16.msra.mxu0 0
        %673 = vmatpush.bf16.msra.mxu0 0
        %674 = vmatpush.bf16.msra.mxu0 0
        %675 = vmatpush.bf16.msra.mxu0 0
        %676 = vmatpush.bf16.msra.mxu0 0
        %677 = vmatpush.bf16.msra.mxu0 %v668
        %678 = vmatmul.bf16.gmra.mxu0 %v664
        %v679 = vpop.f32.mrf.mxu0
        %v680 = vadd.f32 0.0, %v679
        %v681 = vpop.f32.mrf.mxu0
        %682 = vdwg.mxu0
        %v684 = vsel %vm546, %v660, 0
        %v687 = vsel %vm666, %v541, 0
        %689 = vmatpush.bf16.msra.mxu0 0
        %690 = vmatpush.bf16.msra.mxu0 0
        %691 = vmatpush.bf16.msra.mxu0 0
        %692 = vmatpush.bf16.msra.mxu0 0
        %693 = vmatpush.bf16.msra.mxu0 0
        %694 = vmatpush.bf16.msra.mxu0 0
        %695 = vmatpush.bf16.msra.mxu0 0
        %696 = vmatpush.bf16.msra.mxu0 %v687
        %697 = vmatmul.bf16.gmra.mxu0 %v684
        %v698 = vpop.f32.mrf.mxu0
        %v699 = vadd.f32 0.0, %v698
        %v700 = vpop.f32.mrf.mxu0
        %701 = vdwg.mxu0
        %v703 = vsel %vm546, %v661, 0
        %v706 = vsel %vm666, %v543, 0
        %708 = vmatpush.bf16.msra.mxu0 0
        %709 = vmatpush.bf16.msra.mxu0 0
        %710 = vmatpush.bf16.msra.mxu0 0
        %711 = vmatpush.bf16.msra.mxu0 0
        %712 = vmatpush.bf16.msra.mxu0 0
        %713 = vmatpush.bf16.msra.mxu0 0
        %714 = vmatpush.bf16.msra.mxu0 0
        %715 = vmatpush.bf16.msra.mxu0 %v706
        %716 = vmatmul.bf16.gmra.mxu0 %v703
        %v717 = vpop.f32.mrf.mxu0
        %v718 = vadd.f32 0.0, %v717
        %v719 = vpop.f32.mrf.mxu0
        %720 = vdwg.mxu0
        %v722 = vsel %vm546, %v662, 0
        %v725 = vsel %vm666, %v545, 0
        %727 = vmatpush.bf16.msra.mxu0 0
        %728 = vmatpush.bf16.msra.mxu0 0
        %729 = vmatpush.bf16.msra.mxu0 0
        %730 = vmatpush.bf16.msra.mxu0 0
        %731 = vmatpush.bf16.msra.mxu0 0
        %732 = vmatpush.bf16.msra.mxu0 0
        %733 = vmatpush.bf16.msra.mxu0 0
        %734 = vmatpush.bf16.msra.mxu0 %v725
        %735 = vmatmul.bf16.gmra.mxu0 %v722
        %v736 = vpop.f32.mrf.mxu0
        %v737 = vadd.f32 0.0, %v736
        %v738 = vpop.f32.mrf.mxu0
        %739 = vdwg.mxu0
        %v740 = vrcp.pop %v649
        %v741 = vmul.f32 %v649, %v740
        %v742 = vsub.f32 1.0, %v741
        %v743 = vmul.f32 %v740, %v742
        %v744 = vadd.f32 %v740, %v743
        %vm745 = vweird.f32 %v649
        %vm746 = vweird.f32 %v740
        %vm747 = vmor %vm745, %vm746
        %v748 = vsel %vm747, %v740, %v744
        %v749 = vand.u32 2147483647, %v649
        %vm750 = vcmp.eq.f32.partialorder %v749, 8.507059e+37
        %v751 = vand.u32 %v649, 2147483648
        %v752 = vor.u32 1.1754944e-38, %v751
        %v753 = vsel %vm750, %v752, %v748
        %v754 = vrcp.pop %v652
        %v755 = vmul.f32 %v652, %v754
        %v756 = vsub.f32 1.0, %v755
        %v757 = vmul.f32 %v754, %v756
        %v758 = vadd.f32 %v754, %v757
        %vm759 = vweird.f32 %v652
        %vm760 = vweird.f32 %v754
        %vm761 = vmor %vm759, %vm760
        %v762 = vsel %vm761, %v754, %v758
        %v763 = vand.u32 2147483647, %v652
        %vm764 = vcmp.eq.f32.partialorder %v763, 8.507059e+37
        %v765 = vand.u32 %v652, 2147483648
        %v766 = vor.u32 1.1754944e-38, %v765
        %v767 = vsel %vm764, %v766, %v762
        %v768 = vrcp.pop %v655
        %v769 = vmul.f32 %v655, %v768
        %v770 = vsub.f32 1.0, %v769
        %v771 = vmul.f32 %v768, %v770
        %v772 = vadd.f32 %v768, %v771
        %vm773 = vweird.f32 %v655
        %vm774 = vweird.f32 %v768
        %vm775 = vmor %vm773, %vm774
        %v776 = vsel %vm775, %v768, %v772
        %v777 = vand.u32 2147483647, %v655
        %vm778 = vcmp.eq.f32.partialorder %v777, 8.507059e+37
        %v779 = vand.u32 %v655, 2147483648
        %v780 = vor.u32 1.1754944e-38, %v779
        %v781 = vsel %vm778, %v780, %v776
        %v782 = vrcp.pop %v658
        %v783 = vmul.f32 %v658, %v782
        %v784 = vsub.f32 1.0, %v783
        %v785 = vmul.f32 %v782, %v784
        %v786 = vadd.f32 %v782, %v785
        %vm787 = vweird.f32 %v658
        %vm788 = vweird.f32 %v782
        %vm789 = vmor %vm787, %vm788
        %v790 = vsel %vm789, %v782, %v786
        %v791 = vand.u32 2147483647, %v658
        %vm792 = vcmp.eq.f32.partialorder %v791, 8.507059e+37
        %v793 = vand.u32 %v658, 2147483648
        %v794 = vor.u32 1.1754944e-38, %v793
        %v795 = vsel %vm792, %v794, %v790
        %v796 = vmul.f32 %v680, %v753
        %v797 = vmul.f32 %v699, %v767
        %v798 = vmul.f32 %v718, %v781
        %v799 = vmul.f32 %v737, %v795
        %v800 = vld [vmem:[#allocation10] sm:$0xf]
        %v801 = vld [vmem:[#allocation10 + $0x4] sm:$0xf]
        %v802 = vld [vmem:[#allocation10 + $0x8] sm:$0xf]
        %v803 = vld [vmem:[#allocation10 + $0xc] sm:$0xf]
        %v804 = vld [vmem:[%s8] sm:$0x1]
        %v806 = vperm.slane %v804, 0
        %v808 = vadd.f32 %v417, %v806
        %v809 = vpack.c.bf16 %v796, %v796
        %v811 = vsel %vm546, %v809, 0
        %v814 = vsel %vm666, %v800, 0
        %816 = vmatpush.bf16.msra.mxu0 0
        %817 = vmatpush.bf16.msra.mxu0 0
        %818 = vmatpush.bf16.msra.mxu0 0
        %819 = vmatpush.bf16.msra.mxu0 0
        %820 = vmatpush.bf16.msra.mxu0 0
        %821 = vmatpush.bf16.msra.mxu0 0
        %822 = vmatpush.bf16.msra.mxu0 0
        %823 = vmatpush.bf16.msra.mxu0 %v814
        %824 = vmatmul.bf16.gmra.mxu0 %v811
        %v825 = vpop.f32.mrf.mxu0
        %v826 = vadd.f32 0.0, %v825
        %v827 = vpop.f32.mrf.mxu0
        %828 = vdwg.mxu0
        %v829 = vadd.f32 %v808, %v826
        %v830 = vpack.c.bf16 %v797, %v797
        %v832 = vsel %vm546, %v830, 0
        %v835 = vsel %vm666, %v801, 0
        %837 = vmatpush.bf16.msra.mxu0 0
        %838 = vmatpush.bf16.msra.mxu0 0
        %839 = vmatpush.bf16.msra.mxu0 0
        %840 = vmatpush.bf16.msra.mxu0 0
        %841 = vmatpush.bf16.msra.mxu0 0
        %842 = vmatpush.bf16.msra.mxu0 0
        %843 = vmatpush.bf16.msra.mxu0 0
        %844 = vmatpush.bf16.msra.mxu0 %v835
        %845 = vmatmul.bf16.gmra.mxu0 %v832
        %v846 = vpop.f32.mrf.mxu0
        %v847 = vadd.f32 0.0, %v846
        %v848 = vpop.f32.mrf.mxu0
        %849 = vdwg.mxu0
        %v850 = vadd.f32 %v829, %v847
        %v851 = vpack.c.bf16 %v798, %v798
        %v853 = vsel %vm546, %v851, 0
        %v856 = vsel %vm666, %v802, 0
        %858 = vmatpush.bf16.msra.mxu0 0
        %859 = vmatpush.bf16.msra.mxu0 0
        %860 = vmatpush.bf16.msra.mxu0 0
        %861 = vmatpush.bf16.msra.mxu0 0
        %862 = vmatpush.bf16.msra.mxu0 0
        %863 = vmatpush.bf16.msra.mxu0 0
        %864 = vmatpush.bf16.msra.mxu0 0
        %865 = vmatpush.bf16.msra.mxu0 %v856
        %866 = vmatmul.bf16.gmra.mxu0 %v853
        %v867 = vpop.f32.mrf.mxu0
        %v868 = vadd.f32 0.0, %v867
        %v869 = vpop.f32.mrf.mxu0
        %870 = vdwg.mxu0
        %v871 = vadd.f32 %v850, %v868
        %v872 = vpack.c.bf16 %v799, %v799
        %v874 = vsel %vm546, %v872, 0
        %v877 = vsel %vm666, %v803, 0
        %879 = vmatpush.bf16.msra.mxu0 0
        %880 = vmatpush.bf16.msra.mxu0 0
        %881 = vmatpush.bf16.msra.mxu0 0
        %882 = vmatpush.bf16.msra.mxu0 0
        %883 = vmatpush.bf16.msra.mxu0 0
        %884 = vmatpush.bf16.msra.mxu0 0
        %885 = vmatpush.bf16.msra.mxu0 0
        %886 = vmatpush.bf16.msra.mxu0 %v877
        %887 = vmatmul.bf16.gmra.mxu0 %v874
        %v888 = vpop.f32.mrf.mxu0
        %v889 = vadd.f32 0.0, %v888
        %v890 = vpop.f32.mrf.mxu0
        %891 = vdwg.mxu0
        %v892 = vadd.f32 %v871, %v889
        %893 = vst.msk [vmem:[%s415] sm:$0xff] %vm439, %v892
        %s894 = sand.u32 %s230, 1
        %s895 = scalar_lea.sflag [#allocation4], %s894
        %s896 = sand.u32 %s230, 1
        %s897 = smul.addr %s896, 8
        %s898 = scalar_lea.vmem [#allocation11], %s897
        // Predicated region
        $region77: #{tpu_custom_call.1} parent=55 // pred_check
          %p899 = pneg %p240
        $region78: #{tpu_custom_call.1} parent=55 // pred_check_branch
          %901 = sbr.rel (%p899) target = $region80
        $region79: #{tpu_custom_call.1} parent=55 // pred_region
          %903 = vsyncadd %s895, 0
          %s904 = smul.addr %s28, 8
          %s905 = scalar_lea.hbm %s9, %s904
          %s907 = sshll.u32 %s898, 4
          %s908 = int_to_ptr.vmem [resolvable:$true] %s907
          %s909 = sshll.u32 %s905, 4
          %s910 = int_to_ptr.hbm [resolvable:$true] %s909
          %912 = dma.vmem_to_hbm [thread:$0]  %s908, 128, %s910, %s895
        $region80: #{tpu_custom_call.1} parent=55 // pred_fallthru
          _
      $region56: #{tpu_custom_call.1} parent=5 // pred_fallthru
        _
      %p913 = scmp.le.s32.totalorder 2, %s23
      // Predicated region
      $region81: #{tpu_custom_call.1} parent=5 // pred_check
        %p914 = pneg %p913
      $region82: #{tpu_custom_call.1} parent=5 // pred_check_branch
        %916 = sbr.rel (%p914) target = $region84
      $region83: #{tpu_custom_call.1} parent=5 // pred_region
        %s917 = ssub.s32 %s23, 2
        // Predicated region
        $region85: #{tpu_custom_call.1} parent=83 // pred_check
          %p918 = pneg %p246
        $region86: #{tpu_custom_call.1} parent=83 // pred_check_branch
          %920 = sbr.rel (%p918) target = $region88
        $region87: #{tpu_custom_call.1} parent=83 // pred_region
          %s921 = sand.u32 %s231, 1
          %s922 = scalar_lea.sflag [#allocation4], %s921
          %s923 = sand.u32 %s231, 1
          %s924 = smul.addr %s923, 8
          %s925 = scalar_lea.vmem [#allocation11], %s924
          %927 = dma.done %s922, 128
        $region88: #{tpu_custom_call.1} parent=83 // pred_fallthru
          _
      $region84: #{tpu_custom_call.1} parent=5 // pred_fallthru
        _
    $region6: #{tpu_custom_call.1} parent=1 // loop_footer
      %s27 = sadd.s32 1, %s23
    $region7: #{tpu_custom_call.1} parent=1 // loop_footer_branch
      %22 = sbr.rel target = $region3
    $region8: #{tpu_custom_call.1} parent=1 // loop_exit
      _
    %928 = vsyncpa [#allocation3], 1
    %s929 = scalar_lea.sflag [#allocation3], 1
    %930 = vsyncpa %s929, 1
    %931 = vsyncpa [#allocation6], 1
    %932 = vsyncpa [#allocation9], 1
    %933 = vsyncpa [#allocation4], 1
    %s934 = scalar_lea.sflag [#allocation4], 1
    %935 = vsyncpa %s934, 1

</llo_original>
